<compile_context>
chip_gen: v6e
topology: v6e:2x2x1
jax: 0.10.0
libtpu: 0.0.40
codegen_flags: <defaults>
</compile_context>

<pallas_src>
import functools

import jax
import jax.numpy as jnp
from jax.experimental import pallas as pl
from jax.experimental.pallas import tpu as pltpu


def _round_up(x, m):
    return (x + m - 1) // m * m


def _ffn_kernel(x_ref, w13_ref, w2_ref, o_ref, acc_ref, *, th):
    # x_ref:   (tm, dim)     bf16 token tile
    # w13_ref: (dim, 2*th)   bf16 packed [w1_tile_j | w3_tile_j]
    # w2_ref:  (th, dim)     bf16 w2 tile for hidden tile j
    # o_ref:   (tm, dim)     output tile (written once, on the last hidden step)
    # acc_ref: (tm, dim)     f32 accumulator scratch (persists across j)
    j = pl.program_id(1)

    @pl.when(j == 0)
    def _():
        acc_ref[...] = jnp.zeros_like(acc_ref)

    x = x_ref[...]
    # One wide MXU pass computes gate and up projections together (f32 acc).
    h13 = jnp.dot(x, w13_ref[...], preferred_element_type=jnp.float32)
    h1 = h13[:, :th]          # gate projection (f32)
    h3 = h13[:, th:]          # up projection   (f32)
    # SiLU in f32 on the VPU/EUP: silu(z) = z * sigmoid(z)
    h = (h1 * jax.nn.sigmoid(h1)) * h3
    # Down projection, accumulated over hidden tiles in f32.
    acc_ref[...] += jnp.dot(h.astype(w2_ref.dtype), w2_ref[...],
                            preferred_element_type=jnp.float32)

    @pl.when(j == pl.num_programs(1) - 1)
    def _():
        o_ref[...] = acc_ref[...].astype(o_ref.dtype)


@functools.partial(jax.jit, static_argnames=("tm", "th"))
def feed_forward(x, w1, w2, w3, *, tm=256, th=512):
    """LLaMA FeedForward forward pass.

    x:  (..., dim)
    w1: (hidden, dim)   nn.Linear weight layout (out_features, in_features)
    w2: (dim, hidden)
    w3: (hidden, dim)
    Returns an array with x's shape and dtype.
    """
    orig_shape = x.shape
    orig_dtype = x.dtype
    dim = orig_shape[-1]
    hidden = w1.shape[0]
    x2d = x.reshape(-1, dim)
    M = x2d.shape[0]

    # ---- pad to MXU/lane friendly sizes (zero padding is exact here) ----
    dim_p = _round_up(dim, 128)
    tm_eff = _round_up(min(tm, _round_up(M, 16)), 16)      # bf16 sublane pack = 16
    M_p = _round_up(M, tm_eff)
    th_eff = _round_up(min(th, _round_up(hidden, 128)), 128)
    H_p = _round_up(hidden, th_eff)
    n_m = M_p // tm_eff
    n_h = H_p // th_eff

    # ---- bf16 activations / weights for the MXU (f32 accumulation inside) ----
    xb = jnp.pad(x2d, ((0, M_p - M), (0, dim_p - dim))).astype(jnp.bfloat16)
    w1_t = jnp.pad(w1, ((0, H_p - hidden), (0, dim_p - dim))).T.astype(jnp.bfloat16)
    w3_t = jnp.pad(w3, ((0, H_p - hidden), (0, dim_p - dim))).T.astype(jnp.bfloat16)
    w2_t = jnp.pad(w2, ((0, dim_p - dim), (0, H_p - hidden))).T.astype(jnp.bfloat16)

    # Pack w1/w3 so hidden tile j is a contiguous [w1_j | w3_j] slab of width
    # 2*th: one BlockSpec, one DMA stream, one wide matmul per grid step.
    # TODO(synk): in a real model, pre-pack/cast the weights once outside jit.
    w13 = jnp.concatenate(
        [w1_t.reshape(dim_p, n_h, th_eff), w3_t.reshape(dim_p, n_h, th_eff)],
        axis=2).reshape(dim_p, 2 * H_p)

    out_itemsize = jnp.dtype(orig_dtype).itemsize
    # Double-buffered streams + f32 accumulator; cap well under v7x's 64 MiB.
    tile_bytes = (2 * tm_eff * dim_p * 2            # x
                  + 2 * dim_p * (2 * th_eff) * 2    # packed w1|w3
                  + 2 * th_eff * dim_p * 2          # w2
                  + 2 * tm_eff * dim_p * out_itemsize
                  + tm_eff * dim_p * 4)             # accumulator scratch
    vmem_limit = min(56 * 1024 * 1024,
                     max(32 * 1024 * 1024, int(tile_bytes * 3 // 2)))

    cost = pl.CostEstimate(
        flops=6 * M_p * dim_p * H_p,                # 2*M*dim*2H + 2*M*H*dim
        transcendentals=M_p * H_p,                  # one sigmoid per activation
        bytes_accessed=(xb.size * 2
                        + n_m * (w13.size + w2_t.size) * 2
                        + M_p * dim_p * out_itemsize),
    )

    out = pl.pallas_call(
        functools.partial(_ffn_kernel, th=th_eff),
        out_shape=jax.ShapeDtypeStruct((M_p, dim_p), orig_dtype),
        grid_spec=pltpu.PrefetchScalarGridSpec(
            num_scalar_prefetch=0,
            grid=(n_m, n_h),                                        # tokens, hidden
            in_specs=[
                pl.BlockSpec((tm_eff, dim_p), lambda i, j: (i, 0)),       # x tile
                pl.BlockSpec((dim_p, 2 * th_eff), lambda i, j: (0, j)),   # [w1|w3] tile
                pl.BlockSpec((th_eff, dim_p), lambda i, j: (j, 0)),       # w2 tile
            ],
            out_specs=pl.BlockSpec((tm_eff, dim_p), lambda i, j: (i, 0)),
            scratch_shapes=[pltpu.VMEM((tm_eff, dim_p), jnp.float32)],
        ),
        compiler_params=pltpu.CompilerParams(
            dimension_semantics=("parallel", "arbitrary"),
            vmem_limit_bytes=vmem_limit),
        cost_estimate=cost,
    )(xb, w13, w2_t)

    return out[:M, :dim].reshape(orig_shape)


def _llama_hidden_dim(hidden_dim, multiple_of, ffn_dim_multiplier):
    hidden_dim = int(2 * hidden_dim / 3)
    if ffn_dim_multiplier is not None:
        hidden_dim = int(ffn_dim_multiplier * hidden_dim)
    return multiple_of * ((hidden_dim + multiple_of - 1) // multiple_of)


if __name__ == "__main__":
    # Small shapes consistent with the module's forward.
    batch, seq, dim = 2, 8, 128
    hidden_dim_arg, multiple_of, ffn_dim_multiplier = 256, 32, None
    hidden = _llama_hidden_dim(hidden_dim_arg, multiple_of, ffn_dim_multiplier)  # 192

    key = jax.random.PRNGKey(0)
    kx, k1, k2, k3 = jax.random.split(key, 4)

    # nn.Linear weight layout: (out_features, in_features)
    w1 = jax.random.normal(k1, (hidden, dim), jnp.float32) * 0.02
    w2 = jax.random.normal(k2, (dim, hidden), jnp.float32) * 0.02
    w3 = jax.random.normal(k3, (hidden, dim), jnp.float32) * 0.02
    x = jax.random.normal(kx, (batch, seq, dim), jnp.float32)

    # th=128 so this small demo exercises the hidden-tiled accumulation path
    # (hidden=192 pads to 256 -> two hidden tiles).
    out = feed_forward(x, w1, w2, w3, tm=128, th=128)
    jax.block_until_ready(out)
    assert out.shape == x.shape and out.dtype == x.dtype

    # Reference #1: same math as the PyTorch module using the same bf16 matmul
    # inputs with f32 accumulation the kernel uses (tight tolerance).
    x2d = x.reshape(-1, dim)
    xb = x2d.astype(jnp.bfloat16)
    h1 = jnp.dot(xb, w1.T.astype(jnp.bfloat16), preferred_element_type=jnp.float32)
    h3 = jnp.dot(xb, w3.T.astype(jnp.bfloat16), preferred_element_type=jnp.float32)
    h = (h1 * jax.nn.sigmoid(h1)) * h3
    ref_bf16 = jnp.dot(h.astype(jnp.bfloat16), w2.T.astype(jnp.bfloat16),
                       preferred_element_type=jnp.float32).reshape(x.shape)
    assert jnp.allclose(out, ref_bf16, atol=2e-3, rtol=2e-2), \
        float(jnp.max(jnp.abs(out - ref_bf16)))

    # Reference #2: pure-f32 PyTorch-equivalent math (loose tolerance for bf16).
    h1f = x2d @ w1.T
    ref_f32 = (((h1f * jax.nn.sigmoid(h1f)) * (x2d @ w3.T)) @ w2.T).reshape(x.shape)
    assert jnp.allclose(out, ref_f32, atol=5e-3, rtol=5e-2), \
        float(jnp.max(jnp.abs(out - ref_f32)))

    print("KERNEL_OK")
</pallas_src>

<mosaic_0001>
module attributes {stable_mosaic.version = 11 : i64} {
  func.func @_ffn_kernel(%arg0: i32, %arg1: i32, %arg2: memref<16x128xbf16, #tpu.memory_space<vmem>>, %arg3: memref<128x256xbf16, #tpu.memory_space<vmem>>, %arg4: memref<128x128xbf16, #tpu.memory_space<vmem>>, %arg5: memref<16x128xf32, #tpu.memory_space<vmem>>, %arg6: memref<16x128xf32, #tpu.memory_space<vmem>>) attributes {dimension_semantics = [#tpu.dimension_semantics<parallel>, #tpu.dimension_semantics<arbitrary>], iteration_bounds = array<i64: 1, 2>, scalar_prefetch = 0 : i64, scratch_operands = 1 : i64, tpu.core_type = #tpu.core_type<tc>, window_params = [{transform_indices = @transform_0, window_bounds = array<i64: 16, 128>}, {transform_indices = @transform_1, window_bounds = array<i64: 128, 256>}, {transform_indices = @transform_2, window_bounds = array<i64: 128, 128>}, {transform_indices = @transform_3, window_bounds = array<i64: 16, 128>}]} {
    %c0_i32 = arith.constant 0 : i32
    %0 = arith.cmpi eq, %arg1, %c0_i32 : i32
    %1 = arith.extui %0 : i1 to i32
    %c0_i32_0 = arith.constant 0 : i32
    %2 = arith.cmpi ne, %1, %c0_i32_0 : i32
    scf.if %2 {
      %cst_13 = arith.constant 0.000000e+00 : f32
      %24 = vector.broadcast %cst_13 : f32 to vector<16x128xf32>
      %c0_14 = arith.constant 0 : index
      %c0_15 = arith.constant 0 : index
      %25 = vector.load %arg6[%c0_14, %c0_15] : memref<16x128xf32, #tpu.memory_space<vmem>>, vector<16x128xf32>
      tpu.vector_store %arg6[%c0_14, %c0_15], %24 {strides = array<i32>} : memref<16x128xf32, #tpu.memory_space<vmem>>, vector<16x128xf32>,
    } else {
    }
    %c0 = arith.constant 0 : index
    %c0_1 = arith.constant 0 : index
    %3 = vector.load %arg2[%c0, %c0_1] : memref<16x128xbf16, #tpu.memory_space<vmem>>, vector<16x128xbf16>
    %c0_2 = arith.constant 0 : index
    %c0_3 = arith.constant 0 : index
    %4 = vector.load %arg3[%c0_2, %c0_3] : memref<128x256xbf16, #tpu.memory_space<vmem>>, vector<128x256xbf16>
    %cst = arith.constant dense<0.000000e+00> : vector<16x256xf32>
    %5 = tpu.matmul %3, %4, %cst {dimension_numbers = #tpu.dot_dimension_numbers<[1], [0], [0], [1], [0, 0, 1, 1], [], []>} : vector<16x128xbf16>, vector<128x256xbf16>, vector<16x256xf32> -> vector<16x256xf32>
    %6 = vector.extract_strided_slice %5 {offsets = [0, 0], sizes = [16, 128], strides = [1, 1]} : vector<16x256xf32> to vector<16x128xf32>
    %7 = vector.extract_strided_slice %5 {offsets = [0, 128], sizes = [16, 128], strides = [1, 1]} : vector<16x256xf32> to vector<16x128xf32>
    %8 = arith.negf %6 : vector<16x128xf32>
    %9 = math.exp %8 : vector<16x128xf32>
    %cst_4 = arith.constant 1.000000e+00 : f32
    %10 = vector.broadcast %cst_4 : f32 to vector<16x128xf32>
    %11 = arith.addf %10, %9 : vector<16x128xf32>
    %12 = arith.divf %10, %11 : vector<16x128xf32>
    %13 = arith.mulf %6, %12 : vector<16x128xf32>
    %14 = arith.mulf %13, %7 : vector<16x128xf32>
    %c0_5 = arith.constant 0 : index
    %c0_6 = arith.constant 0 : index
    %15 = vector.load %arg6[%c0_5, %c0_6] : memref<16x128xf32, #tpu.memory_space<vmem>>, vector<16x128xf32>
    %16 = arith.truncf %14 : vector<16x128xf32> to vector<16x128xbf16>
    %c0_7 = arith.constant 0 : index
    %c0_8 = arith.constant 0 : index
    %17 = vector.load %arg4[%c0_7, %c0_8] : memref<128x128xbf16, #tpu.memory_space<vmem>>, vector<128x128xbf16>
    %cst_9 = arith.constant dense<0.000000e+00> : vector<16x128xf32>
    %18 = tpu.matmul %16, %17, %cst_9 {dimension_numbers = #tpu.dot_dimension_numbers<[1], [0], [0], [1], [0, 0, 1, 1], [], []>} : vector<16x128xbf16>, vector<128x128xbf16>, vector<16x128xf32> -> vector<16x128xf32>
    %19 = arith.addf %15, %18 : vector<16x128xf32>
    %c0_10 = arith.constant 0 : index
    %c0_11 = arith.constant 0 : index
    %20 = vector.load %arg6[%c0_10, %c0_11] : memref<16x128xf32, #tpu.memory_space<vmem>>, vector<16x128xf32>
    tpu.vector_store %arg6[%c0_10, %c0_11], %19 {strides = array<i32>} : memref<16x128xf32, #tpu.memory_space<vmem>>, vector<16x128xf32>,
    %c1_i32 = arith.constant 1 : i32
    %21 = arith.cmpi eq, %arg1, %c1_i32 : i32
    %22 = arith.extui %21 : i1 to i32
    %c0_i32_12 = arith.constant 0 : i32
    %23 = arith.cmpi ne, %22, %c0_i32_12 : i32
    scf.if %23 {
      %c0_13 = arith.constant 0 : index
      %c0_14 = arith.constant 0 : index
      %24 = vector.load %arg6[%c0_13, %c0_14] : memref<16x128xf32, #tpu.memory_space<vmem>>, vector<16x128xf32>
      %c0_15 = arith.constant 0 : index
      %c0_16 = arith.constant 0 : index
      %25 = vector.load %arg5[%c0_15, %c0_16] : memref<16x128xf32, #tpu.memory_space<vmem>>, vector<16x128xf32>
      tpu.vector_store %arg5[%c0_15, %c0_16], %24 {strides = array<i32>} : memref<16x128xf32, #tpu.memory_space<vmem>>, vector<16x128xf32>,
    } else {
    }
    return
  }
  func.func @transform_0(%arg0: i32, %arg1: i32) -> (i32, i32) {
    %c0_i32 = arith.constant 0 : i32
    %c0_i32_0 = arith.constant 0 : i32
    return %arg0, %c0_i32 : i32, i32
  }
  func.func @transform_1(%arg0: i32, %arg1: i32) -> (i32, i32) {
    %c0_i32 = arith.constant 0 : i32
    %c0_i32_0 = arith.constant 0 : i32
    return %c0_i32, %arg1 : i32, i32
  }
  func.func @transform_2(%arg0: i32, %arg1: i32) -> (i32, i32) {
    %c0_i32 = arith.constant 0 : i32
    %c0_i32_0 = arith.constant 0 : i32
    return %arg1, %c0_i32 : i32, i32
  }
  func.func @transform_3(%arg0: i32, %arg1: i32) -> (i32, i32) {
    %c0_i32 = arith.constant 0 : i32
    %c0_i32_0 = arith.constant 0 : i32
    return %arg0, %c0_i32 : i32, i32
  }
}

</mosaic_0001>

<llo_original>
// kernel: feed_forward.1
$region0: #{feed_forward.1}
  #allocation0 [shape = 'u32[]', space=smem, size = 0x4, offset = 0x4, fixed_abs, tag = 'smem constant byte address 0x4 - core index']
  #allocation1 [shape = 'u32[144,128]{1,0:T(1,128)}', space=vmem, size = 0x12000, scoped, tag = 'internal scratch']
  #allocation2 [shape = 'f32[16,128]{1,0:T(8,128)}', space=vmem, size = 0x2000, scoped, tag = 'scratch operand']
  %s0 = inlined_call_operand.vmem [shape: bf16[16,128], index: 0, kind: input, shape index: {}]
  %s1 = inlined_call_operand.vmem [shape: bf16[128,512], index: 1, kind: input, shape index: {}]
  %s2 = inlined_call_operand.vmem [shape: bf16[256,128], index: 2, kind: input, shape index: {}]
  %s3 = inlined_call_operand.hbm [shape: f32[16,128], index: 3, kind: output, shape index: {}]
  %s4 = sld [smem:[#allocation0]]
  $region91: #{feed_forward.1} parent=0
    _
  %s6 = ssub.s32 1, %s4
  %s7 = scalar_select 0, %s6, %s4
  $region1: #{feed_forward.1} parent=0
    #allocation3 [shape = 'u8[131072]{0}', space=vmem, size = 0x20000, scoped, tag = 'input window, operand 1']
    #allocation4 [shape = 'u8[8192]{0}', space=vmem, size = 0x2000, scoped, tag = 'output window, operand 0, single buffered']
    #allocation5 [shape = 's32[2]{0}', space=sflag, size = 0x8, scoped, tag = 'scoped memory for feed_forward.1']
    %8 = vsyncpa [#allocation5], 0
    loop: start=0, step=1, limit=4
    $region2: #{feed_forward.1} parent=1 // loop_pre_header
      _
    $region3: #{feed_forward.1} parent=1 // loop_header
      %s10 = sphi 0, %s14
      %p11 = scmp.ge.s32.totalorder %s10, 4
      %s17 = sphi 0, %s29
      %s18 = sphi 0, %s25
      %s19 = sphi 0, %s17
      %s20 = sphi 0, %s18
      %s21 = sphi 0, %s19
      %s22 = sphi 0, %s20
      %s32 = sphi 0, %s34
      %s35 = sphi 0, %s32
      %s36 = sphi 0, %s35
      %s52 = sphi 0, %s36
      %s58 = sphi 0, %s60
      %s61 = sphi 0, %s58
      %s62 = sphi 0, %s61
      %s78 = sphi 0, %s62
      %s84 = sphi 0, %s86
      %s87 = sphi 0, %s84
      %s88 = sphi 0, %s87
      %s104 = sphi 0, %s88
      %s110 = sphi 0, %s112
      %s113 = sphi 0, %s110
      %s114 = sphi 0, %s113
      %s130 = sphi 0, %s114
    $region4: #{feed_forward.1} parent=1 // loop_header_branch
      %13 = sbr.rel (%p11) target = $region8
    $region5: #{feed_forward.1} parent=1 // loop_body
      %s15 = ssub.s32 %s10, 1
      %s16 = ssub.s32 %s10, 2
      %s23 = sadd.s32 1, %s18
      %p24 = scmp.ge.s32.totalorder %s23, 2
      %s25 = scalar_select %p24, 0, %s23
      %s26 = sadd.s32 1, %s17
      %s27 = scalar_select %p24, %s26, %s17
      %p28 = scmp.ge.s32.totalorder %s27, 1
      %s29 = scalar_select %p28, 0, %s27
      %s30 = ssub.s32 %s17, %s29
      %p31 = scmp.eq.s32.totalorder %s30, 0
      %s33 = sadd.s32 %s32, 1
      %s34 = scalar_select %p31, %s32, %s33
      %p37 = pneg %p31
      %p38 = scmp.eq.s32.totalorder %s10, 1
      %p39 = por %p37, %p38
      %p40 = scmp.ne.s32.totalorder %s32, %s35
      %p41 = scmp.eq.s32.totalorder %s10, 0
      %p42 = por %p40, %p41
      %p43 = scmp.ne.s32.totalorder %s32, %s35
      %p44 = scmp.eq.s32.totalorder %s15, 1
      %p45 = por %p43, %p44
      %p46 = scmp.ne.s32.totalorder %s35, %s36
      %p47 = scmp.eq.s32.totalorder %s15, 0
      %p48 = por %p46, %p47
      %p49 = scmp.ne.s32.totalorder %s35, %s36
      %p50 = scmp.eq.s32.totalorder %s16, 1
      %p51 = por %p49, %p50
      %p53 = scmp.ne.s32.totalorder %s36, %s52
      %p54 = scmp.eq.s32.totalorder %s16, 0
      %p55 = por %p53, %p54
      %s56 = ssub.s32 %s18, %s25
      %p57 = scmp.eq.s32.totalorder %s56, 0
      %s59 = sadd.s32 %s58, 1
      %s60 = scalar_select %p57, %s58, %s59
      %p63 = pneg %p57
      %p64 = scmp.eq.s32.totalorder %s10, 1
      %p65 = por %p63, %p64
      %p66 = scmp.ne.s32.totalorder %s58, %s61
      %p67 = scmp.eq.s32.totalorder %s10, 0
      %p68 = por %p66, %p67
      %p69 = scmp.ne.s32.totalorder %s58, %s61
      %p70 = scmp.eq.s32.totalorder %s15, 1
      %p71 = por %p69, %p70
      %p72 = scmp.ne.s32.totalorder %s61, %s62
      %p73 = scmp.eq.s32.totalorder %s15, 0
      %p74 = por %p72, %p73
      %p75 = scmp.ne.s32.totalorder %s61, %s62
      %p76 = scmp.eq.s32.totalorder %s16, 1
      %p77 = por %p75, %p76
      %p79 = scmp.ne.s32.totalorder %s62, %s78
      %p80 = scmp.eq.s32.totalorder %s16, 0
      %p81 = por %p79, %p80
      %s82 = ssub.s32 %s18, %s25
      %p83 = scmp.eq.s32.totalorder %s82, 0
      %s85 = sadd.s32 %s84, 1
      %s86 = scalar_select %p83, %s84, %s85
      %p89 = pneg %p83
      %p90 = scmp.eq.s32.totalorder %s10, 1
      %p91 = por %p89, %p90
      %p92 = scmp.ne.s32.totalorder %s84, %s87
      %p93 = scmp.eq.s32.totalorder %s10, 0
      %p94 = por %p92, %p93
      %p95 = scmp.ne.s32.totalorder %s84, %s87
      %p96 = scmp.eq.s32.totalorder %s15, 1
      %p97 = por %p95, %p96
      %p98 = scmp.ne.s32.totalorder %s87, %s88
      %p99 = scmp.eq.s32.totalorder %s15, 0
      %p100 = por %p98, %p99
      %p101 = scmp.ne.s32.totalorder %s87, %s88
      %p102 = scmp.eq.s32.totalorder %s16, 1
      %p103 = por %p101, %p102
      %p105 = scmp.ne.s32.totalorder %s88, %s104
      %p106 = scmp.eq.s32.totalorder %s16, 0
      %p107 = por %p105, %p106
      %s108 = ssub.s32 %s17, %s29
      %p109 = scmp.eq.s32.totalorder %s108, 0
      %s111 = sadd.s32 %s110, 1
      %s112 = scalar_select %p109, %s110, %s111
      %p115 = pneg %p109
      %p116 = scmp.eq.s32.totalorder %s10, 1
      %p117 = por %p115, %p116
      %p118 = scmp.ne.s32.totalorder %s110, %s113
      %p119 = scmp.eq.s32.totalorder %s10, 0
      %p120 = por %p118, %p119
      %p121 = scmp.ne.s32.totalorder %s110, %s113
      %p122 = scmp.eq.s32.totalorder %s15, 1
      %p123 = por %p121, %p122
      %p124 = scmp.ne.s32.totalorder %s113, %s114
      %p125 = scmp.eq.s32.totalorder %s15, 0
      %p126 = por %p124, %p125
      %p127 = scmp.ne.s32.totalorder %s113, %s114
      %p128 = scmp.eq.s32.totalorder %s16, 1
      %p129 = por %p127, %p128
      %p131 = scmp.ne.s32.totalorder %s114, %s130
      %p132 = scmp.eq.s32.totalorder %s16, 0
      %p133 = por %p131, %p132
      %p134 = scmp.le.s32.totalorder 1, %s10
      %p135 = scmp.lt.s32.totalorder %s10, 3
      %p136 = pnand %p134, %p135
      %p137 = pneg %p136
      // Predicated region
      $region9: #{feed_forward.1} parent=5 // pred_check
        _
      $region10: #{feed_forward.1} parent=5 // pred_check_branch
        %139 = sbr.rel (%p136) target = $region12
      $region11: #{feed_forward.1} parent=5 // pred_region
        %s140 = ssub.s32 %s10, 1
        // Predicated region
        $region13: #{feed_forward.1} parent=11 // pred_check
          %p141 = pneg %p48
        $region14: #{feed_forward.1} parent=11 // pred_check_branch
          %143 = sbr.rel (%p141) target = $region16
        $region15: #{feed_forward.1} parent=11 // pred_region
          %s144 = smul.u32 2, %s19
          %p145 = scmp.lt.s32.totalorder %s144, 1
          %s146 = scalar_select %p145, %s144, 1
          %s147 = smul.addr %s146, 4
          %s148 = scalar_lea.vmem %s0, %s147
          %s149 = smul.u32 2, %s19
        $region16: #{feed_forward.1} parent=11 // pred_fallthru
          _
      $region12: #{feed_forward.1} parent=5 // pred_fallthru
        _
      %p150 = scmp.lt.s32.totalorder %s10, 2
      // Predicated region
      $region17: #{feed_forward.1} parent=5 // pred_check
        %p151 = pneg %p150
      $region18: #{feed_forward.1} parent=5 // pred_check_branch
        %153 = sbr.rel (%p151) target = $region20
      $region19: #{feed_forward.1} parent=5 // pred_region
        // Predicated region
        $region21: #{feed_forward.1} parent=19 // pred_check
          %p154 = pneg %p68
        $region22: #{feed_forward.1} parent=19 // pred_check_branch
          %156 = sbr.rel (%p154) target = $region24
        $region23: #{feed_forward.1} parent=19 // pred_region
          %s157 = sand.u32 %s58, 1
          %s158 = sand.u32 %s58, 1
          %s159 = smul.addr %s158, 128
          %s160 = scalar_lea.vmem [#allocation3], %s159
          %s161 = smul.u32 2, %s18
          %s162 = smul.addr %s161, 4
          %s163 = scalar_lea.vmem %s1, %s162
          // Predicated region
          $region25: #{feed_forward.1} parent=23 // pred_check
            _
          $region26: #{feed_forward.1} parent=23 // pred_check_branch
            %165 = sbr.rel (0) target = $region28
          $region27: #{feed_forward.1} parent=23 // pred_region
            // Predicated region
            $region29: #{feed_forward.1} parent=27 // pred_check
              _
            $region30: #{feed_forward.1} parent=27 // pred_check_branch
              %167 = sbr.rel (0) target = $region32
            $region31: #{feed_forward.1} parent=27 // pred_region
              // Predicated region
              $region44: #{feed_forward.1} parent=31 // pred_check
                _
              $region45: #{feed_forward.1} parent=31 // pred_check_branch
                %213 = sbr.rel (0) target = $region47
              $region46: #{feed_forward.1} parent=31 // pred_region
                loop: start=0, step=1, limit=1
                $region48: #{feed_forward.1} parent=46 // loop_pre_header
                  _
                $region49: #{feed_forward.1} parent=46 // loop_header
                  %s215 = sphi 0, %s219
                  %p216 = scmp.ge.s32.totalorder %s215, 1
                  %s220 = sphi %s163, %s163
                  %s221 = sphi %s160, %s160
                $region50: #{feed_forward.1} parent=46 // loop_header_branch
                  %218 = sbr.rel (%p216) target = $region54
                $region51: #{feed_forward.1} parent=46 // loop_body
                  %v222 = vld [vmem:[%s220] sm:$0xff]
                  %223 = vst [vmem:[%s221] sm:$0xff] %v222
                  %v224 = vld [vmem:[%s220 + $0x10] sm:$0xff]
                  %225 = vst [vmem:[%s221 + $0x8] sm:$0xff] %v224
                  %v226 = vld [vmem:[%s220 + $0x20] sm:$0xff]
                  %227 = vst [vmem:[%s221 + $0x10] sm:$0xff] %v226
                  %v228 = vld [vmem:[%s220 + $0x30] sm:$0xff]
                  %229 = vst [vmem:[%s221 + $0x18] sm:$0xff] %v228
                  %v230 = vld [vmem:[%s220 + $0x40] sm:$0xff]
                  %231 = vst [vmem:[%s221 + $0x20] sm:$0xff] %v230
                  %v232 = vld [vmem:[%s220 + $0x50] sm:$0xff]
                  %233 = vst [vmem:[%s221 + $0x28] sm:$0xff] %v232
                  %v234 = vld [vmem:[%s220 + $0x60] sm:$0xff]
                  %235 = vst [vmem:[%s221 + $0x30] sm:$0xff] %v234
                  %v236 = vld [vmem:[%s220 + $0x70] sm:$0xff]
                  %237 = vst [vmem:[%s221 + $0x38] sm:$0xff] %v236
                  %v238 = vld [vmem:[%s220 + $0x80] sm:$0xff]
                  %239 = vst [vmem:[%s221 + $0x40] sm:$0xff] %v238
                  %v240 = vld [vmem:[%s220 + $0x90] sm:$0xff]
                  %241 = vst [vmem:[%s221 + $0x48] sm:$0xff] %v240
                  %v242 = vld [vmem:[%s220 + $0xa0] sm:$0xff]
                  %243 = vst [vmem:[%s221 + $0x50] sm:$0xff] %v242
                  %v244 = vld [vmem:[%s220 + $0xb0] sm:$0xff]
                  %245 = vst [vmem:[%s221 + $0x58] sm:$0xff] %v244
                  %v246 = vld [vmem:[%s220 + $0xc0] sm:$0xff]
                  %247 = vst [vmem:[%s221 + $0x60] sm:$0xff] %v246
                  %v248 = vld [vmem:[%s220 + $0xd0] sm:$0xff]
                  %249 = vst [vmem:[%s221 + $0x68] sm:$0xff] %v248
                  %v250 = vld [vmem:[%s220 + $0xe0] sm:$0xff]
                  %251 = vst [vmem:[%s221 + $0x70] sm:$0xff] %v250
                  %v252 = vld [vmem:[%s220 + $0xf0] sm:$0xff]
                  %253 = vst [vmem:[%s221 + $0x78] sm:$0xff] %v252
                $region52: #{feed_forward.1} parent=46 // loop_footer
                  %s219 = sadd.s32 1, %s215
                $region53: #{feed_forward.1} parent=46 // loop_footer_branch
                  %214 = sbr.rel target = $region49
                $region54: #{feed_forward.1} parent=46 // loop_exit
                  _
              $region47: #{feed_forward.1} parent=31 // pred_fallthru
                _
              // Predicated region
              $region55: #{feed_forward.1} parent=31 // pred_check
                _
              $region56: #{feed_forward.1} parent=31 // pred_check_branch
                %255 = sbr.rel target = $region58
              $region57: #{feed_forward.1} parent=31 // pred_region
                _
              $region58: #{feed_forward.1} parent=31 // pred_fallthru
                _
            $region32: #{feed_forward.1} parent=27 // pred_fallthru
              _
            // Predicated region
            $region33: #{feed_forward.1} parent=27 // pred_check
              _
            $region34: #{feed_forward.1} parent=27 // pred_check_branch
              %169 = sbr.rel target = $region36
            $region35: #{feed_forward.1} parent=27 // pred_region
              %s171 = ssub.s32 256, 1
              loop: start=0, step=1, limit=1
              $region37: #{feed_forward.1} parent=35 // loop_pre_header
                _
              $region38: #{feed_forward.1} parent=35 // loop_header
                %s173 = sphi 0, %s177
                %p174 = scmp.ge.s32.totalorder %s173, 1
                %s178 = sphi %s163, %s163
                %s179 = sphi %s160, %s160
              $region39: #{feed_forward.1} parent=35 // loop_header_branch
                %176 = sbr.rel (%p174) target = $region43
              $region40: #{feed_forward.1} parent=35 // loop_body
                %v180 = vld [vmem:[%s178] sm:%s171]
                %181 = vst [vmem:[%s179] sm:%s171] %v180
                %v182 = vld [vmem:[%s178 + $0x10] sm:%s171]
                %183 = vst [vmem:[%s179 + $0x8] sm:%s171] %v182
                %v184 = vld [vmem:[%s178 + $0x20] sm:%s171]
                %185 = vst [vmem:[%s179 + $0x10] sm:%s171] %v184
                %v186 = vld [vmem:[%s178 + $0x30] sm:%s171]
                %187 = vst [vmem:[%s179 + $0x18] sm:%s171] %v186
                %v188 = vld [vmem:[%s178 + $0x40] sm:%s171]
                %189 = vst [vmem:[%s179 + $0x20] sm:%s171] %v188
                %v190 = vld [vmem:[%s178 + $0x50] sm:%s171]
                %191 = vst [vmem:[%s179 + $0x28] sm:%s171] %v190
                %v192 = vld [vmem:[%s178 + $0x60] sm:%s171]
                %193 = vst [vmem:[%s179 + $0x30] sm:%s171] %v192
                %v194 = vld [vmem:[%s178 + $0x70] sm:%s171]
                %195 = vst [vmem:[%s179 + $0x38] sm:%s171] %v194
                %v196 = vld [vmem:[%s178 + $0x80] sm:%s171]
                %197 = vst [vmem:[%s179 + $0x40] sm:%s171] %v196
                %v198 = vld [vmem:[%s178 + $0x90] sm:%s171]
                %199 = vst [vmem:[%s179 + $0x48] sm:%s171] %v198
                %v200 = vld [vmem:[%s178 + $0xa0] sm:%s171]
                %201 = vst [vmem:[%s179 + $0x50] sm:%s171] %v200
                %v202 = vld [vmem:[%s178 + $0xb0] sm:%s171]
                %203 = vst [vmem:[%s179 + $0x58] sm:%s171] %v202
                %v204 = vld [vmem:[%s178 + $0xc0] sm:%s171]
                %205 = vst [vmem:[%s179 + $0x60] sm:%s171] %v204
                %v206 = vld [vmem:[%s178 + $0xd0] sm:%s171]
                %207 = vst [vmem:[%s179 + $0x68] sm:%s171] %v206
                %v208 = vld [vmem:[%s178 + $0xe0] sm:%s171]
                %209 = vst [vmem:[%s179 + $0x70] sm:%s171] %v208
                %v210 = vld [vmem:[%s178 + $0xf0] sm:%s171]
                %211 = vst [vmem:[%s179 + $0x78] sm:%s171] %v210
              $region41: #{feed_forward.1} parent=35 // loop_footer
                %s177 = sadd.s32 1, %s173
              $region42: #{feed_forward.1} parent=35 // loop_footer_branch
                %172 = sbr.rel target = $region38
              $region43: #{feed_forward.1} parent=35 // loop_exit
                _
            $region36: #{feed_forward.1} parent=27 // pred_fallthru
              _
          $region28: #{feed_forward.1} parent=23 // pred_fallthru
            _
          %256 = vnop
        $region24: #{feed_forward.1} parent=19 // pred_fallthru
          _
        // Predicated region
        $region59: #{feed_forward.1} parent=19 // pred_check
          %p257 = pneg %p94
        $region60: #{feed_forward.1} parent=19 // pred_check_branch
          %259 = sbr.rel (%p257) target = $region62
        $region61: #{feed_forward.1} parent=19 // pred_region
          %s260 = smul.u32 16, %s18
          %p261 = scmp.lt.s32.totalorder %s260, 31
          %s262 = scalar_select %p261, %s260, 31
          %s263 = smul.addr %s262, 4
          %s264 = scalar_lea.vmem %s2, %s263
          %s265 = smul.u32 16, %s18
        $region62: #{feed_forward.1} parent=19 // pred_fallthru
          _
      $region20: #{feed_forward.1} parent=5 // pred_fallthru
        _
      %p266 = scmp.le.s32.totalorder 1, %s10
      %p267 = scmp.lt.s32.totalorder %s10, 3
      %p268 = pnand %p266, %p267
      %p269 = pneg %p268
      // Predicated region
      $region63: #{feed_forward.1} parent=5 // pred_check
        _
      $region64: #{feed_forward.1} parent=5 // pred_check_branch
        %271 = sbr.rel (%p268) target = $region66
      $region65: #{feed_forward.1} parent=5 // pred_region
        %s272 = ssub.s32 %s10, 1
        %s273 = sand.u32 %s61, 1
        %s274 = sand.u32 %s61, 1
        %s275 = smul.addr %s274, 128
        %s276 = scalar_lea.vmem [#allocation3], %s275
        // Predicated region
        $region67: #{feed_forward.1} parent=65 // pred_check
          %p277 = pneg %p74
        $region68: #{feed_forward.1} parent=65 // pred_check_branch
          %279 = sbr.rel (%p277) target = $region70
        $region69: #{feed_forward.1} parent=65 // pred_region
          _
        $region70: #{feed_forward.1} parent=65 // pred_fallthru
          _
        %s280 = smul.u32 2, %s19
        %p281 = scmp.lt.s32.totalorder %s280, 1
        %s282 = scalar_select %p281, %s280, 1
        %s283 = smul.addr %s282, 4
        %s284 = scalar_lea.vmem %s0, %s283
        %p285 = pneg %p48
        %p286 = pneg %p45
        %s287 = sand.u32 %s61, 1
        %s288 = sand.u32 %s61, 1
        %s289 = smul.addr %s288, 128
        %s290 = scalar_lea.vmem [#allocation3], %s289
        %p291 = pneg %p74
        %p292 = pneg %p71
        %s293 = smul.u32 16, %s20
        %p294 = scmp.lt.s32.totalorder %s293, 31
        %s295 = scalar_select %p294, %s293, 31
        %s296 = smul.addr %s295, 4
        %s297 = scalar_lea.vmem %s2, %s296
        %p298 = pneg %p100
        %p299 = pneg %p97
        %p300 = pneg %p126
        %p301 = pneg %p123
        %s302 = smul.u32 2, %s19
        %p303 = scmp.lt.s32.totalorder %s302, 1
        %s304 = scalar_select %p303, %s302, 1
        %s305 = smul.addr %s304, 4
        %s306 = scalar_lea.vmem %s0, %s305
        %s307 = smul.u32 2, %s19
        %s308 = smul.u32 2, %s20
        %s309 = smul.u32 16, %s20
        %p310 = scmp.lt.s32.totalorder %s309, 31
        %s311 = scalar_select %p310, %s309, 31
        %s312 = smul.addr %s311, 4
        %s313 = scalar_lea.vmem %s2, %s312
        %s314 = smul.u32 16, %s20
        %s315 = smul.u32 2, %s19
        %p317 = scmp.eq.s32.totalorder %s20, 0
        // Predicated region
        $region71: #{feed_forward.1} parent=65 // pred_check
          %p318 = pneg %p317
        $region72: #{feed_forward.1} parent=65 // pred_check_branch
          %320 = sbr.rel (%p318) target = $region74
        $region73: #{feed_forward.1} parent=65 // pred_region
          %321 = vst [vmem:[#allocation2] sm:$0xff] 0.0
          %322 = vst [vmem:[#allocation2 + $0x8] sm:$0xff] 0.0
        $region74: #{feed_forward.1} parent=65 // pred_fallthru
          _
        %v323 = vld [vmem:[%s306] sm:$0xf]
        %v324 = vld [vmem:[%s306 + $0x4] sm:$0xf]
        %v325 = vld [vmem:[%s276] sm:$0xff]
        %v326 = vld [vmem:[%s276 + $0x8] sm:$0xff]
        %v327 = vld [vmem:[%s276 + $0x10] sm:$0xff]
        %v328 = vld [vmem:[%s276 + $0x18] sm:$0xff]
        %v329 = vld [vmem:[%s276 + $0x20] sm:$0xff]
        %v330 = vld [vmem:[%s276 + $0x28] sm:$0xff]
        %v331 = vld [vmem:[%s276 + $0x30] sm:$0xff]
        %v332 = vld [vmem:[%s276 + $0x38] sm:$0xff]
        %v333 = vld [vmem:[%s276 + $0x40] sm:$0xff]
        %v334 = vld [vmem:[%s276 + $0x48] sm:$0xff]
        %v335 = vld [vmem:[%s276 + $0x50] sm:$0xff]
        %v336 = vld [vmem:[%s276 + $0x58] sm:$0xff]
        %v337 = vld [vmem:[%s276 + $0x60] sm:$0xff]
        %v338 = vld [vmem:[%s276 + $0x68] sm:$0xff]
        %v339 = vld [vmem:[%s276 + $0x70] sm:$0xff]
        %v340 = vld [vmem:[%s276 + $0x78] sm:$0xff]
        %v343 = vunpack.c.l.b16 %v323
        %v344 = vunpack.c.l.b16 %v324
        %v345 = vpack.c.b16 %v344, %v343
        %v363 = vunpack.c.l.b16 %v325
        %v364 = vunpack.c.h.b16 %v325
        %v365 = vunpack.c.l.b16 %v326
        %v366 = vunpack.c.h.b16 %v326
        %v367 = vunpack.c.l.b16 %v327
        %v368 = vunpack.c.h.b16 %v327
        %v369 = vunpack.c.l.b16 %v328
        %v370 = vunpack.c.h.b16 %v328
        %v371 = vunpack.c.l.b16 %v329
        %v372 = vunpack.c.h.b16 %v329
        %v373 = vunpack.c.l.b16 %v330
        %v374 = vunpack.c.h.b16 %v330
        %v375 = vunpack.c.l.b16 %v331
        %v376 = vunpack.c.h.b16 %v331
        %v377 = vunpack.c.l.b16 %v332
        %v378 = vunpack.c.h.b16 %v332
        %v379 = vunpack.c.l.b16 %v333
        %v380 = vunpack.c.h.b16 %v333
        %v381 = vunpack.c.l.b16 %v334
        %v382 = vunpack.c.h.b16 %v334
        %v383 = vunpack.c.l.b16 %v335
        %v384 = vunpack.c.h.b16 %v335
        %v385 = vunpack.c.l.b16 %v336
        %v386 = vunpack.c.h.b16 %v336
        %v387 = vunpack.c.l.b16 %v337
        %v388 = vunpack.c.h.b16 %v337
        %v389 = vunpack.c.l.b16 %v338
        %v390 = vunpack.c.h.b16 %v338
        %v391 = vunpack.c.l.b16 %v339
        %v392 = vunpack.c.h.b16 %v339
        %v393 = vunpack.c.l.b16 %v340
        %v394 = vunpack.c.h.b16 %v340
        %v395 = vpack.c.b16 %v365, %v363
        %v396 = vpack.c.b16 %v366, %v364
        %v397 = vpack.c.b16 %v369, %v367
        %v398 = vpack.c.b16 %v370, %v368
        %v399 = vpack.c.b16 %v373, %v371
        %v400 = vpack.c.b16 %v374, %v372
        %v401 = vpack.c.b16 %v377, %v375
        %v402 = vpack.c.b16 %v378, %v376
        %v403 = vpack.c.b16 %v381, %v379
        %v404 = vpack.c.b16 %v382, %v380
        %v405 = vpack.c.b16 %v385, %v383
        %v406 = vpack.c.b16 %v386, %v384
        %v407 = vpack.c.b16 %v389, %v387
        %v408 = vpack.c.b16 %v390, %v388
        %v409 = vpack.c.b16 %v393, %v391
        %v410 = vpack.c.b16 %v394, %v392
        %427 = vmatprep.subr.bf16.mxu0 %v410
        %428 = vmatpush1.bf16.msra.mxu0 %v409
        %429 = vmatprep.subr.bf16.mxu0 %v408
        %430 = vmatpush1.bf16.msra.mxu0 %v407
        %431 = vmatprep.subr.bf16.mxu0 %v406
        %432 = vmatpush1.bf16.msra.mxu0 %v405
        %433 = vmatprep.subr.bf16.mxu0 %v404
        %434 = vmatpush1.bf16.msra.mxu0 %v403
        %435 = vmatprep.subr.bf16.mxu0 %v402
        %436 = vmatpush1.bf16.msra.mxu0 %v401
        %437 = vmatprep.subr.bf16.mxu0 %v400
        %438 = vmatpush1.bf16.msra.mxu0 %v399
        %439 = vmatprep.subr.bf16.mxu0 %v398
        %440 = vmatpush1.bf16.msra.mxu0 %v397
        %441 = vmatprep.subr.bf16.mxu0 %v396
        %442 = vmatpush1.bf16.msra.mxu0 %v395
        %443 = vmatprep.subr.bf16.mxu0 0
        %444 = vmatpush2.bf16.msra.mxu0 0
        %445 = vmatprep.subr.bf16.mxu0 0
        %446 = vmatpush2.bf16.msra.mxu0 0
        %447 = vmatprep.subr.bf16.mxu0 0
        %448 = vmatpush2.bf16.msra.mxu0 0
        %449 = vmatprep.subr.bf16.mxu0 0
        %450 = vmatpush2.bf16.msra.mxu0 0
        %451 = vmatprep.subr.bf16.mxu0 0
        %452 = vmatpush2.bf16.msra.mxu0 0
        %453 = vmatprep.subr.bf16.mxu0 0
        %454 = vmatpush2.bf16.msra.mxu0 0
        %455 = vmatprep.subr.bf16.mxu0 0
        %456 = vmatpush2.bf16.msra.mxu0 0
        %457 = vmatprep.subr.bf16.mxu0 0
        %458 = vmatpush2.bf16.msra.mxu0 0
        %459 = vmatprep.mubr.bf16.mxu0 0
        %460 = vmatmul.mubr.bf16.gmra.mxu0 %v345
        %v461 = vpop.f32.mrf.mxu0
        %v462 = vadd.f32 0.0, %v461
        %v463 = vpop.f32.mrf.mxu0
        %v464 = vadd.f32 0.0, %v463
        %v465 = vpop.f32.mrf.mxu0
        %v466 = vadd.f32 0.0, %v465
        %v467 = vpop.f32.mrf.mxu0
        %v468 = vadd.f32 0.0, %v467
        %469 = vdwg.mxu0
        %v470 = vxor.u32 %v462, 2147483648
        %v471 = vxor.u32 %v466, 2147483648
        %v472 = vmul.f32 %v470, 1.442695
        %v473 = vpow.pop %v472
        %v474 = vmul.f32 %v471, 1.442695
        %v475 = vpow.pop %v474
        %v476 = vadd.f32 %v473, 1.0
        %v477 = vadd.f32 %v475, 1.0
        %v478 = vrcp.pop %v476
        %v479 = vmul.f32 1.0, %v478
        %v480 = vrcp.pop %v477
        %v481 = vmul.f32 1.0, %v480
        %v482 = vmul.f32 %v462, %v479
        %v483 = vmul.f32 %v466, %v481
        %v484 = vmul.f32 %v482, %v464
        %v485 = vmul.f32 %v483, %v468
        %v486 = vld [vmem:[#allocation2] sm:$0xff]
        %v487 = vld [vmem:[#allocation2 + $0x8] sm:$0xff]
        %v488 = vpack.c.bf16 %v485, %v484
        %v489 = vld [vmem:[%s313] sm:$0xf]
        %v490 = vld [vmem:[%s313 + $0x4] sm:$0xf]
        %v491 = vld [vmem:[%s313 + $0x8] sm:$0xf]
        %v492 = vld [vmem:[%s313 + $0xc] sm:$0xf]
        %v493 = vld [vmem:[%s313 + $0x10] sm:$0xf]
        %v494 = vld [vmem:[%s313 + $0x14] sm:$0xf]
        %v495 = vld [vmem:[%s313 + $0x18] sm:$0xf]
        %v496 = vld [vmem:[%s313 + $0x1c] sm:$0xf]
        %v497 = vld [vmem:[%s313 + $0x20] sm:$0xf]
        %v498 = vld [vmem:[%s313 + $0x24] sm:$0xf]
        %v499 = vld [vmem:[%s313 + $0x28] sm:$0xf]
        %v500 = vld [vmem:[%s313 + $0x2c] sm:$0xf]
        %v501 = vld [vmem:[%s313 + $0x30] sm:$0xf]
        %v502 = vld [vmem:[%s313 + $0x34] sm:$0xf]
        %v503 = vld [vmem:[%s313 + $0x38] sm:$0xf]
        %v504 = vld [vmem:[%s313 + $0x3c] sm:$0xf]
        %v521 = vunpack.c.l.b16 %v489
        %v522 = vunpack.c.l.b16 %v490
        %v523 = vunpack.c.l.b16 %v491
        %v524 = vunpack.c.l.b16 %v492
        %v525 = vunpack.c.l.b16 %v493
        %v526 = vunpack.c.l.b16 %v494
        %v527 = vunpack.c.l.b16 %v495
        %v528 = vunpack.c.l.b16 %v496
        %v529 = vunpack.c.l.b16 %v497
        %v530 = vunpack.c.l.b16 %v498
        %v531 = vunpack.c.l.b16 %v499
        %v532 = vunpack.c.l.b16 %v500
        %v533 = vunpack.c.l.b16 %v501
        %v534 = vunpack.c.l.b16 %v502
        %v535 = vunpack.c.l.b16 %v503
        %v536 = vunpack.c.l.b16 %v504
        %v537 = vpack.c.b16 %v522, %v521
        %v538 = vpack.c.b16 %v524, %v523
        %v539 = vpack.c.b16 %v526, %v525
        %v540 = vpack.c.b16 %v528, %v527
        %v541 = vpack.c.b16 %v530, %v529
        %v542 = vpack.c.b16 %v532, %v531
        %v543 = vpack.c.b16 %v534, %v533
        %v544 = vpack.c.b16 %v536, %v535
        %553 = vmatprep.subr.bf16.mxu0 0
        %554 = vmatpush1.bf16.msra.mxu0 %v544
        %555 = vmatprep.subr.bf16.mxu0 0
        %556 = vmatpush1.bf16.msra.mxu0 %v543
        %557 = vmatprep.subr.bf16.mxu0 0
        %558 = vmatpush1.bf16.msra.mxu0 %v542
        %559 = vmatprep.subr.bf16.mxu0 0
        %560 = vmatpush1.bf16.msra.mxu0 %v541
        %561 = vmatprep.subr.bf16.mxu0 0
        %562 = vmatpush1.bf16.msra.mxu0 %v540
        %563 = vmatprep.subr.bf16.mxu0 0
        %564 = vmatpush1.bf16.msra.mxu0 %v539
        %565 = vmatprep.subr.bf16.mxu0 0
        %566 = vmatpush1.bf16.msra.mxu0 %v538
        %567 = vmatprep.subr.bf16.mxu0 0
        %568 = vmatpush1.bf16.msra.mxu0 %v537
        %569 = vmatprep.subr.bf16.mxu0 0
        %570 = vmatpush2.bf16.msra.mxu0 0
        %571 = vmatprep.subr.bf16.mxu0 0
        %572 = vmatpush2.bf16.msra.mxu0 0
        %573 = vmatprep.subr.bf16.mxu0 0
        %574 = vmatpush2.bf16.msra.mxu0 0
        %575 = vmatprep.subr.bf16.mxu0 0
        %576 = vmatpush2.bf16.msra.mxu0 0
        %577 = vmatprep.subr.bf16.mxu0 0
        %578 = vmatpush2.bf16.msra.mxu0 0
        %579 = vmatprep.subr.bf16.mxu0 0
        %580 = vmatpush2.bf16.msra.mxu0 0
        %581 = vmatprep.subr.bf16.mxu0 0
        %582 = vmatpush2.bf16.msra.mxu0 0
        %583 = vmatprep.subr.bf16.mxu0 0
        %584 = vmatpush2.bf16.msra.mxu0 0
        %585 = vmatprep.mubr.bf16.mxu0 0
        %586 = vmatmul.mubr.bf16.gmra.mxu0 %v488
        %v587 = vpop.f32.mrf.mxu0
        %v588 = vadd.f32 0.0, %v587
        %v589 = vpop.f32.mrf.mxu0
        %v590 = vpop.f32.mrf.mxu0
        %v591 = vadd.f32 0.0, %v590
        %v592 = vpop.f32.mrf.mxu0
        %593 = vdwg.mxu0
        %v594 = vadd.f32 %v486, %v588
        %v595 = vadd.f32 %v487, %v591
        %596 = vst [vmem:[#allocation2] sm:$0xff] %v594
        %597 = vst [vmem:[#allocation2 + $0x8] sm:$0xff] %v595
        %p598 = scmp.eq.s32.totalorder %s20, 1
        // Predicated region
        $region75: #{feed_forward.1} parent=65 // pred_check
          %p599 = pneg %p598
        $region76: #{feed_forward.1} parent=65 // pred_check_branch
          %601 = sbr.rel (%p599) target = $region78
        $region77: #{feed_forward.1} parent=65 // pred_region
          %v602 = vld [vmem:[#allocation2] sm:$0xff]
          %v603 = vld [vmem:[#allocation2 + $0x8] sm:$0xff]
          %604 = vst [vmem:[#allocation4] sm:$0xff] %v602
          %605 = vst [vmem:[#allocation4 + $0x8] sm:$0xff] %v603
        $region78: #{feed_forward.1} parent=65 // pred_fallthru
          _
        // Predicated region
        $region79: #{feed_forward.1} parent=65 // pred_check
          %p606 = pneg %p123
        $region80: #{feed_forward.1} parent=65 // pred_check_branch
          %608 = sbr.rel (%p606) target = $region82
        $region81: #{feed_forward.1} parent=65 // pred_region
          %s609 = smul.u32 2, %s19
          %s611 = ssub.s32 256, 256
          %612 = vsyncadd [#allocation5], %s611
          %s613 = smul.addr %s609, 128
          %s614 = scalar_lea.hbm %s3, %s613
          %s615 = sshll.u32 [#allocation4], 4
          %s616 = int_to_ptr.vmem [resolvable:$true] %s615
          %621 = dma.vmem_to_hbm [thread:$0]  %s616, 256, %s614, [#allocation5], 128, 128, 8
        $region82: #{feed_forward.1} parent=65 // pred_fallthru
          _
        // Predicated region
        $region83: #{feed_forward.1} parent=65 // pred_check
          %p622 = pneg %p123
        $region84: #{feed_forward.1} parent=65 // pred_check_branch
          %624 = sbr.rel (%p622) target = $region86
        $region85: #{feed_forward.1} parent=65 // pred_region
          %625 = dma.done [#allocation5], 256
        $region86: #{feed_forward.1} parent=65 // pred_fallthru
          _
      $region66: #{feed_forward.1} parent=5 // pred_fallthru
        _
      %p626 = scmp.le.s32.totalorder 2, %s10
      // Predicated region
      $region87: #{feed_forward.1} parent=5 // pred_check
        %p627 = pneg %p626
      $region88: #{feed_forward.1} parent=5 // pred_check_branch
        %629 = sbr.rel (%p627) target = $region90
      $region89: #{feed_forward.1} parent=5 // pred_region
        %s630 = ssub.s32 %s10, 2
      $region90: #{feed_forward.1} parent=5 // pred_fallthru
        _
    $region6: #{feed_forward.1} parent=1 // loop_footer
      %s14 = sadd.s32 1, %s10
    $region7: #{feed_forward.1} parent=1 // loop_footer_branch
      %9 = sbr.rel target = $region3
    $region8: #{feed_forward.1} parent=1 // loop_exit
      _
    %631 = vsyncpa [#allocation5], 1
    %s632 = scalar_lea.sflag [#allocation5], 1
    %633 = vsyncpa %s632, 1

</llo_original>
